<compile_context>
chip_gen: v7x
topology: tpu7x:2x2x1
jax: 0.10.0
libtpu: 0.0.40
codegen_flags: <defaults>
</compile_context>

<pallas_src>
import jax
import jax.numpy as jnp
from jax.experimental import pallas as pl
from jax.experimental.pallas import tpu as pltpu

_LANE = 128        # vreg lane width
_SUBLANE = 8       # vreg sublane count (f32)
_MAX_BLOCK_B = 1024


def _round_up(x, m):
    return ((x + m - 1) // m) * m


def _pick_block_b(B):
    """Row-block size: big enough to amortize per-step overhead, >=2 blocks
    when possible so the parallel axis shards over both v7x TensorCores."""
    blk = min(_MAX_BLOCK_B, _round_up(B, _SUBLANE))
    if B > _SUBLANE and pl.cdiv(B, blk) < 2:
        blk = _round_up(pl.cdiv(B, 2), _SUBLANE)
    return max(blk, _SUBLANE)


def action_embedder_kernel(x_ref, w1_ref, b1_ref, w2_ref, b2_ref, out_ref):
    # x_ref: (block_b, K) activations (time-mean either folded into w1 or
    # already reduced in the wrapper).  Weight last dims are lane-dense (128).
    x = x_ref[...]

    # Linear1 + SiLU; f32 accumulation on the MXU, sigmoid on the EUP slot.
    h = jnp.dot(x, w1_ref[...], preferred_element_type=jnp.float32) + b1_ref[...]
    h = h * jax.nn.sigmoid(h)

    # Linear2; full-lane (unmasked) store.
    out = jnp.dot(h, w2_ref[...], preferred_element_type=jnp.float32) + b2_ref[...]
    out_ref[...] = out.astype(out_ref.dtype)


def prepare_params(w1, b1, w2, b2, T):
    """One-time weight preprocessing (hoisted out of the per-call forward).

    Folds the time-mean into W1 when T*d_action <= 128 (exact, by linearity)
    and zero-pads the d_model axis to a multiple of 128 lanes.  Zero padding
    is exact: padded hidden columns are SiLU(0)=0 and hit zero W2 rows.
    """
    d_action, d_model = w1.shape
    N_pad = _round_up(max(d_model, _LANE), _LANE)

    fold_mean = (T * d_action) <= _LANE
    if fold_mean:
        # mean(a, 1) @ w1 == a.reshape(B, T*d_action) @ (tile(w1, (T,1)) / T)
        w1_eff = jnp.tile(w1, (T, 1)) * (1.0 / T)       # (T*d_action, d_model)
    else:
        # Long sequences: keep W1 small; wrapper pre-reduces the mean instead.
        w1_eff = w1                                      # (d_action, d_model)
    K_w = w1_eff.shape[0]

    w1_p = jnp.zeros((K_w, N_pad), w1.dtype).at[:, :d_model].set(w1_eff)
    b1_p = jnp.zeros((1, N_pad), b1.dtype).at[:, :d_model].set(b1.reshape(1, -1))
    w2_p = jnp.zeros((N_pad, N_pad), w2.dtype).at[:d_model, :d_model].set(w2)
    b2_p = jnp.zeros((1, N_pad), b2.dtype).at[:, :d_model].set(b2.reshape(1, -1))

    return dict(w1_p=w1_p, b1_p=b1_p, w2_p=w2_p, b2_p=b2_p,
                fold_mean=fold_mean, d_model=d_model, T=T)


def action_embedder_forward(actions, params):
    """actions: (B, T, d_action) -> (B, d_model); mean over time + MLP(SiLU)."""
    B, T, d_action = actions.shape
    d_model = params["d_model"]
    w1_p, b1_p = params["w1_p"], params["b1_p"]
    w2_p, b2_p = params["w2_p"], params["b2_p"]
    N_pad = w2_p.shape[0]

    if params["fold_mean"]:
        x2d = actions.reshape(B, T * d_action)   # no-copy view; mean is in w1_p
    else:
        x2d = jnp.mean(actions, axis=1)          # single XLA reduce for long T
    K = x2d.shape[1]

    blk = _pick_block_b(B)
    grid = (pl.cdiv(B, blk),)

    # Explicit scoped-VMEM budget: double-buffered activation/output row
    # blocks plus (conservatively double-counted) resident weights + headroom.
    itemsize = jnp.dtype(actions.dtype).itemsize
    vmem_need = (2 * blk * (K + N_pad) * itemsize
                 + 2 * (w1_p.size + w2_p.size + b1_p.size + b2_p.size)
                 * jnp.dtype(w1_p.dtype).itemsize)
    vmem_limit = int(min(max(4 * vmem_need, 32 << 20), 64 << 20))

    out_p = pl.pallas_call(
        action_embedder_kernel,
        out_shape=jax.ShapeDtypeStruct((B, N_pad), actions.dtype),
        grid_spec=pltpu.PrefetchScalarGridSpec(
            num_scalar_prefetch=0,
            grid=grid,
            in_specs=[
                # Row-tiled activations; last dim = full array extent (no pad).
                pl.BlockSpec((blk, K), lambda i: (i, 0)),
                # Weights / biases resident in VMEM (constant index maps).
                pl.BlockSpec(w1_p.shape, lambda i: (0, 0)),
                pl.BlockSpec((1, N_pad), lambda i: (0, 0)),
                pl.BlockSpec((N_pad, N_pad), lambda i: (0, 0)),
                pl.BlockSpec((1, N_pad), lambda i: (0, 0)),
            ],
            out_specs=pl.BlockSpec((blk, N_pad), lambda i: (i, 0)),
        ),
        compiler_params=pltpu.CompilerParams(
            # Row blocks are independent -> shard across both TCs on v7x.
            dimension_semantics=("parallel",),
            vmem_limit_bytes=vmem_limit,
        ),
    )(x2d, w1_p, b1_p, w2_p, b2_p)

    return out_p[:, :d_model]


def init_params(key, d_action, d_model):
    """Deterministic synthetic params matching nn.Linear shapes.

    Stored as (in_features, out_features) so the kernel computes x @ W + b.
    """
    k1, k2, k3, k4 = jax.random.split(key, 4)
    bound1 = 1.0 / (d_action ** 0.5)
    bound2 = 1.0 / (d_model ** 0.5)
    w1 = jax.random.uniform(k1, (d_action, d_model), jnp.float32, -bound1, bound1)
    b1 = jax.random.uniform(k2, (1, d_model), jnp.float32, -bound1, bound1)
    w2 = jax.random.uniform(k3, (d_model, d_model), jnp.float32, -bound2, bound2)
    b2 = jax.random.uniform(k4, (1, d_model), jnp.float32, -bound2, bound2)
    return w1, b1, w2, b2


def reference_forward(actions, w1, b1, w2, b2):
    mean = jnp.mean(actions, axis=1)
    h = mean @ w1 + b1
    h = h * jax.nn.sigmoid(h)
    return h @ w2 + b2


if __name__ == "__main__":
    key = jax.random.PRNGKey(0)
    k_act, k_par = jax.random.split(key)

    # Small shapes consistent with the module: batch=2, seq=8, d_action=4, d_model=32
    B, T, d_action, d_model = 2, 8, 4, 32
    actions = jax.random.normal(k_act, (B, T, d_action), dtype=jnp.float32)

    w1, b1, w2, b2 = init_params(k_par, d_action, d_model)

    # Hoisted: weight fusing/padding happens once at init, not per forward call.
    params = prepare_params(w1, b1, w2, b2, T)

    out = action_embedder_forward(actions, params)
    out = jax.block_until_ready(out)

    ref = reference_forward(actions, w1, b1, w2, b2)
    assert out.shape == (B, d_model)
    assert jnp.allclose(out, ref, atol=1e-5, rtol=1e-5), "mismatch vs pure-JAX reference"

    print("KERNEL_OK")
</pallas_src>

<mosaic_0001>
module attributes {stable_mosaic.version = 11 : i64} {
  func.func @action_embedder_kernel(%arg0: i32, %arg1: memref<8x32xf32, #tpu.memory_space<vmem>>, %arg2: memref<32x128xf32, #tpu.memory_space<vmem>>, %arg3: memref<1x128xf32, #tpu.memory_space<vmem>>, %arg4: memref<128x128xf32, #tpu.memory_space<vmem>>, %arg5: memref<1x128xf32, #tpu.memory_space<vmem>>, %arg6: memref<8x128xf32, #tpu.memory_space<vmem>>) attributes {dimension_semantics = [#tpu.dimension_semantics<parallel>], iteration_bounds = array<i64: 1>, scalar_prefetch = 0 : i64, scratch_operands = 0 : i64, tpu.core_type = #tpu.core_type<tc>, window_params = [{transform_indices = @transform_0, window_bounds = array<i64: 8, 32>}, {pipeline_mode = #tpu.pipeline_mode<synchronous>, transform_indices = @transform_1, window_bounds = array<i64: 32, 128>}, {pipeline_mode = #tpu.pipeline_mode<synchronous>, transform_indices = @transform_2, window_bounds = array<i64: 1, 128>}, {pipeline_mode = #tpu.pipeline_mode<synchronous>, transform_indices = @transform_3, window_bounds = array<i64: 128, 128>}, {pipeline_mode = #tpu.pipeline_mode<synchronous>, transform_indices = @transform_4, window_bounds = array<i64: 1, 128>}, {transform_indices = @transform_5, window_bounds = array<i64: 8, 128>}]} {
    %c0 = arith.constant 0 : index
    %c0_0 = arith.constant 0 : index
    %0 = vector.load %arg1[%c0, %c0_0] : memref<8x32xf32, #tpu.memory_space<vmem>>, vector<8x32xf32>
    %c0_1 = arith.constant 0 : index
    %c0_2 = arith.constant 0 : index
    %1 = vector.load %arg2[%c0_1, %c0_2] : memref<32x128xf32, #tpu.memory_space<vmem>>, vector<32x128xf32>
    %cst = arith.constant dense<0.000000e+00> : vector<8x128xf32>
    %2 = tpu.matmul %0, %1, %cst {dimension_numbers = #tpu.dot_dimension_numbers<[1], [0], [0], [1], [0, 0, 1, 1], [], []>} : vector<8x32xf32>, vector<32x128xf32>, vector<8x128xf32> -> vector<8x128xf32>
    %c0_3 = arith.constant 0 : index
    %c0_4 = arith.constant 0 : index
    %3 = vector.load %arg3[%c0_3, %c0_4] : memref<1x128xf32, #tpu.memory_space<vmem>>, vector<1x128xf32>
    %4 = vector.broadcast %3 : vector<1x128xf32> to vector<8x128xf32>
    %5 = arith.addf %2, %4 : vector<8x128xf32>
    %6 = arith.negf %5 : vector<8x128xf32>
    %7 = math.exp %6 : vector<8x128xf32>
    %cst_5 = arith.constant 1.000000e+00 : f32
    %8 = vector.broadcast %cst_5 : f32 to vector<8x128xf32>
    %9 = arith.addf %8, %7 : vector<8x128xf32>
    %10 = arith.divf %8, %9 : vector<8x128xf32>
    %11 = arith.mulf %5, %10 : vector<8x128xf32>
    %c0_6 = arith.constant 0 : index
    %c0_7 = arith.constant 0 : index
    %12 = vector.load %arg4[%c0_6, %c0_7] : memref<128x128xf32, #tpu.memory_space<vmem>>, vector<128x128xf32>
    %cst_8 = arith.constant dense<0.000000e+00> : vector<8x128xf32>
    %13 = tpu.matmul %11, %12, %cst_8 {dimension_numbers = #tpu.dot_dimension_numbers<[1], [0], [0], [1], [0, 0, 1, 1], [], []>} : vector<8x128xf32>, vector<128x128xf32>, vector<8x128xf32> -> vector<8x128xf32>
    %c0_9 = arith.constant 0 : index
    %c0_10 = arith.constant 0 : index
    %14 = vector.load %arg5[%c0_9, %c0_10] : memref<1x128xf32, #tpu.memory_space<vmem>>, vector<1x128xf32>
    %15 = vector.broadcast %14 : vector<1x128xf32> to vector<8x128xf32>
    %16 = arith.addf %13, %15 : vector<8x128xf32>
    %c0_11 = arith.constant 0 : index
    %c0_12 = arith.constant 0 : index
    %17 = vector.load %arg6[%c0_11, %c0_12] : memref<8x128xf32, #tpu.memory_space<vmem>>, vector<8x128xf32>
    tpu.vector_store %arg6[%c0_11, %c0_12], %16 {strides = array<i32>} : memref<8x128xf32, #tpu.memory_space<vmem>>, vector<8x128xf32>,
    return
  }
  func.func @transform_0(%arg0: i32) -> (i32, i32) {
    %c0_i32 = arith.constant 0 : i32
    %c0_i32_0 = arith.constant 0 : i32
    return %arg0, %c0_i32 : i32, i32
  }
  func.func @transform_1(%arg0: i32) -> (i32, i32) {
    %c0_i32 = arith.constant 0 : i32
    %c0_i32_0 = arith.constant 0 : i32
    %c0_i32_1 = arith.constant 0 : i32
    return %c0_i32, %c0_i32_0 : i32, i32
  }
  func.func @transform_2(%arg0: i32) -> (i32, i32) {
    %c0_i32 = arith.constant 0 : i32
    %c0_i32_0 = arith.constant 0 : i32
    %c0_i32_1 = arith.constant 0 : i32
    return %c0_i32, %c0_i32_0 : i32, i32
  }
  func.func @transform_3(%arg0: i32) -> (i32, i32) {
    %c0_i32 = arith.constant 0 : i32
    %c0_i32_0 = arith.constant 0 : i32
    %c0_i32_1 = arith.constant 0 : i32
    return %c0_i32, %c0_i32_0 : i32, i32
  }
  func.func @transform_4(%arg0: i32) -> (i32, i32) {
    %c0_i32 = arith.constant 0 : i32
    %c0_i32_0 = arith.constant 0 : i32
    %c0_i32_1 = arith.constant 0 : i32
    return %c0_i32, %c0_i32_0 : i32, i32
  }
  func.func @transform_5(%arg0: i32) -> (i32, i32) {
    %c0_i32 = arith.constant 0 : i32
    %c0_i32_0 = arith.constant 0 : i32
    return %arg0, %c0_i32 : i32, i32
  }
}

</mosaic_0001>

<llo_original>
// kernel: tpu_custom_call.1
$region0: #{tpu_custom_call.1}
  #allocation0 [shape = 'u32[]', space=smem, size = 0x4, offset = 0x4, fixed_abs, tag = 'smem constant byte address 0x4 - core index']
  #allocation1 [shape = 'u32[144,128]{1,0:T(1,128)}', space=vmem, size = 0x12000, scoped, tag = 'internal scratch']
  %s0 = inlined_call_operand.hbm [shape: f32[2,32], index: 0, kind: input, shape index: {}]
  %s1 = inlined_call_operand.hbm [shape: f32[32,128], index: 1, kind: input, shape index: {}]
  %s2 = inlined_call_operand.vmem [shape: f32[1,128], index: 2, kind: input, shape index: {}]
  %s3 = inlined_call_operand.hbm [shape: f32[128,128], index: 3, kind: input, shape index: {}]
  %s4 = inlined_call_operand.vmem [shape: f32[1,128], index: 4, kind: input, shape index: {}]
  %s5 = inlined_call_operand.hbm [shape: f32[2,128], index: 5, kind: output, shape index: {}]
  %s6 = sld [smem:[#allocation0]]
  $region42: #{tpu_custom_call.1} parent=0
    _
  %s8 = ssub.s32 1, %s6
  %s9 = scalar_select 0, %s8, %s6
  $region1: #{tpu_custom_call.1} parent=0
    #allocation2 [shape = 'u8[4096]{0}', space=vmem, size = 0x1000, scoped, tag = 'input window, operand 0, single buffered']
    #allocation3 [shape = 's32[1]{0}', space=sflag, size = 0x4, scoped, tag = 'scoped memory for tpu_custom_call.1']
    #allocation4 [shape = 's32[1]{0}', space=sflag, size = 0x4, scoped, tag = 'scoped memory for tpu_custom_call.1']
    #allocation5 [shape = 'u8[16384]{0}', space=vmem, size = 0x4000, scoped, tag = 'input window, operand 1, single buffered']
    #allocation6 [shape = 's32[1]{0}', space=sflag, size = 0x4, scoped, tag = 'scoped memory for tpu_custom_call.1']
    #allocation7 [shape = 'u8[65536]{0}', space=vmem, size = 0x10000, scoped, tag = 'input window, operand 3, single buffered']
    #allocation8 [shape = 'u8[4096]{0}', space=vmem, size = 0x1000, scoped, tag = 'output window, operand 0, single buffered']
    %10 = vsyncpa [#allocation3], 0
    %11 = vsyncpa [#allocation6], 0
    %12 = vsyncpa [#allocation4], 0
    // Predicated region
    $region2: #{tpu_custom_call.1} parent=1 // pred_check
      _
    $region3: #{tpu_custom_call.1} parent=1 // pred_check_branch
      %14 = sbr.rel (0) target = $region5
    $region4: #{tpu_custom_call.1} parent=1 // pred_region
      %s16 = ssub.s32 128, 32
      %17 = vsyncadd [#allocation3], %s16
      %s18 = sshll.u32 [#allocation2], 4
      %s19 = int_to_ptr.vmem [resolvable:$true] %s18
      %24 = dma.hbm_to_vmem [thread:$0]  %s0, 32, %s19, [#allocation3], 32, 32, 2
    $region5: #{tpu_custom_call.1} parent=1 // pred_fallthru
      _
    // Predicated region
    $region6: #{tpu_custom_call.1} parent=1 // pred_check
      _
    $region7: #{tpu_custom_call.1} parent=1 // pred_check_branch
      %26 = sbr.rel (0) target = $region9
    $region8: #{tpu_custom_call.1} parent=1 // pred_region
      %s28 = ssub.s32 512, 512
      %29 = vsyncadd [#allocation6], %s28
      %s30 = sshll.u32 [#allocation5], 4
      %s31 = int_to_ptr.vmem [resolvable:$true] %s30
      %36 = dma.hbm_to_vmem [thread:$0]  %s1, 512, %s31, [#allocation6], 128, 128, 8
    $region9: #{tpu_custom_call.1} parent=1 // pred_fallthru
      _
    // Predicated region
    $region10: #{tpu_custom_call.1} parent=1 // pred_check
      _
    $region11: #{tpu_custom_call.1} parent=1 // pred_check_branch
      %38 = sbr.rel (0) target = $region13
    $region12: #{tpu_custom_call.1} parent=1 // pred_region
      _
    $region13: #{tpu_custom_call.1} parent=1 // pred_fallthru
      _
    // Predicated region
    $region14: #{tpu_custom_call.1} parent=1 // pred_check
      _
    $region15: #{tpu_custom_call.1} parent=1 // pred_check_branch
      %40 = sbr.rel (0) target = $region17
    $region16: #{tpu_custom_call.1} parent=1 // pred_region
      %s42 = ssub.s32 2048, 2048
      %43 = vsyncadd [#allocation6], %s42
      %s44 = sshll.u32 [#allocation7], 4
      %s45 = int_to_ptr.vmem [resolvable:$true] %s44
      %50 = dma.hbm_to_vmem [thread:$0]  %s3, 2048, %s45, [#allocation6], 128, 128, 8
    $region17: #{tpu_custom_call.1} parent=1 // pred_fallthru
      _
    // Predicated region
    $region18: #{tpu_custom_call.1} parent=1 // pred_check
      _
    $region19: #{tpu_custom_call.1} parent=1 // pred_check_branch
      %52 = sbr.rel (0) target = $region21
    $region20: #{tpu_custom_call.1} parent=1 // pred_region
      _
    $region21: #{tpu_custom_call.1} parent=1 // pred_fallthru
      _
    // Predicated region
    $region22: #{tpu_custom_call.1} parent=1 // pred_check
      _
    $region23: #{tpu_custom_call.1} parent=1 // pred_check_branch
      %54 = sbr.rel (0) target = $region25
    $region24: #{tpu_custom_call.1} parent=1 // pred_region
      %55 = dma.done [#allocation3], 128
    $region25: #{tpu_custom_call.1} parent=1 // pred_fallthru
      _
    // Predicated region
    $region26: #{tpu_custom_call.1} parent=1 // pred_check
      _
    $region27: #{tpu_custom_call.1} parent=1 // pred_check_branch
      %57 = sbr.rel (0) target = $region29
    $region28: #{tpu_custom_call.1} parent=1 // pred_region
      %58 = dma.done [#allocation6], 512
    $region29: #{tpu_custom_call.1} parent=1 // pred_fallthru
      _
    // Predicated region
    $region30: #{tpu_custom_call.1} parent=1 // pred_check
      _
    $region31: #{tpu_custom_call.1} parent=1 // pred_check_branch
      %60 = sbr.rel (0) target = $region33
    $region32: #{tpu_custom_call.1} parent=1 // pred_region
      %61 = dma.done [#allocation6], 2048
    $region33: #{tpu_custom_call.1} parent=1 // pred_fallthru
      _
    %v62 = vld [vmem:[#allocation2] sm:$0xff]
    %v63 = vld [vmem:[#allocation5] sm:$0xff]
    %v64 = vld [vmem:[#allocation5 + $0x8] sm:$0xff]
    %v65 = vld [vmem:[#allocation5 + $0x10] sm:$0xff]
    %v66 = vld [vmem:[#allocation5 + $0x18] sm:$0xff]
    %v67 = vld [vmem:[%s2] sm:$0x1]
    %v69 = vlaneseq
    %v70 = vshrl.u32 %v69, 7
    %v71 = vsub.s32 0, %v70
    %v72 = vrot.slane %v67, %v71
    %vm74 = vcmask 261120
    %v76 = vsel %vm74, %v62, 0
    %78 = vmatprep.subr.mxu0 0.0
    %79 = vmatpush1.msra.mxu0 %v63
    %80 = vmatprep.subr.mxu0 0.0
    %81 = vmatpush1.msra.mxu0 %v64
    %82 = vmatprep.subr.mxu0 0.0
    %83 = vmatpush1.msra.mxu0 %v65
    %84 = vmatprep.subr.mxu0 0.0
    %85 = vmatpush1.msra.mxu0 %v66
    %86 = vmatprep.subr.mxu0 0.0
    %87 = vmatpush1.msra.mxu0 0.0
    %88 = vmatprep.subr.mxu0 0.0
    %89 = vmatpush1.msra.mxu0 0.0
    %90 = vmatprep.subr.mxu0 0.0
    %91 = vmatpush1.msra.mxu0 0.0
    %92 = vmatprep.subr.mxu0 0.0
    %93 = vmatpush1.msra.mxu0 0.0
    %94 = vmatprep.subr.mxu0 0.0
    %95 = vmatpush1.msra.mxu0 0.0
    %96 = vmatprep.subr.mxu0 0.0
    %97 = vmatpush1.msra.mxu0 0.0
    %98 = vmatprep.subr.mxu0 0.0
    %99 = vmatpush1.msra.mxu0 0.0
    %100 = vmatprep.subr.mxu0 0.0
    %101 = vmatpush1.msra.mxu0 0.0
    %102 = vmatprep.subr.mxu0 0.0
    %103 = vmatpush1.msra.mxu0 0.0
    %104 = vmatprep.subr.mxu0 0.0
    %105 = vmatpush1.msra.mxu0 0.0
    %106 = vmatprep.subr.mxu0 0.0
    %107 = vmatpush1.msra.mxu0 0.0
    %108 = vmatprep.subr.mxu0 0.0
    %109 = vmatpush1.msra.mxu0 0.0
    %110 = vmatprep.subr.mxu0 0.0
    %111 = vmatpush1.msra.mxu0 0.0
    %112 = vmatprep.subr.mxu0 0.0
    %113 = vmatpush1.msra.mxu0 0.0
    %114 = vmatprep.subr.mxu0 0.0
    %115 = vmatpush1.msra.mxu0 0.0
    %116 = vmatprep.subr.mxu0 0.0
    %117 = vmatpush1.msra.mxu0 0.0
    %118 = vmatprep.subr.mxu0 0.0
    %119 = vmatpush1.msra.mxu0 0.0
    %120 = vmatprep.subr.mxu0 0.0
    %121 = vmatpush1.msra.mxu0 0.0
    %122 = vmatprep.subr.mxu0 0.0
    %123 = vmatpush1.msra.mxu0 0.0
    %124 = vmatprep.subr.mxu0 0.0
    %125 = vmatpush1.msra.mxu0 0.0
    %126 = vmatprep.subr.mxu0 0.0
    %127 = vmatpush1.msra.mxu0 0.0
    %128 = vmatprep.subr.mxu0 0.0
    %129 = vmatpush1.msra.mxu0 0.0
    %130 = vmatprep.subr.mxu0 0.0
    %131 = vmatpush1.msra.mxu0 0.0
    %132 = vmatprep.subr.mxu0 0.0
    %133 = vmatpush1.msra.mxu0 0.0
    %134 = vmatprep.subr.mxu0 0.0
    %135 = vmatpush1.msra.mxu0 0.0
    %136 = vmatprep.subr.mxu0 0.0
    %137 = vmatpush1.msra.mxu0 0.0
    %138 = vmatprep.subr.mxu0 0.0
    %139 = vmatpush1.msra.mxu0 0.0
    %140 = vmatprep.subr.mxu0 0.0
    %141 = vmatpush1.msra.mxu0 0.0
    %142 = vmatprep.mubr.f32.mxu0 0.0
    %143 = vmatmul.mubr.f32.gmra.mrb[0].mxu0 %v76
    %v144 = vpop.f32.mrb[0].mxu0
    %v145 = vadd.f32 %v72, %v144
    %v146 = vpop.f32.mrb[0].mxu0
    %147 = vdwg.mxu0
    %v148 = vxor.u32 %v145, 2147483648
    %v149 = vmul.f32 %v148, 1.442695
    %v150 = vpow.pop %v149
    %v151 = vadd.f32 %v150, 1.0
    %v152 = vrcp.pop %v151
    %v153 = vmul.f32 1.0, %v152
    %v154 = vmul.f32 %v145, %v153
    %v155 = vld [vmem:[#allocation7] sm:$0xff]
    %v156 = vld [vmem:[#allocation7 + $0x8] sm:$0xff]
    %v157 = vld [vmem:[#allocation7 + $0x10] sm:$0xff]
    %v158 = vld [vmem:[#allocation7 + $0x18] sm:$0xff]
    %v159 = vld [vmem:[#allocation7 + $0x20] sm:$0xff]
    %v160 = vld [vmem:[#allocation7 + $0x28] sm:$0xff]
    %v161 = vld [vmem:[#allocation7 + $0x30] sm:$0xff]
    %v162 = vld [vmem:[#allocation7 + $0x38] sm:$0xff]
    %v163 = vld [vmem:[#allocation7 + $0x40] sm:$0xff]
    %v164 = vld [vmem:[#allocation7 + $0x48] sm:$0xff]
    %v165 = vld [vmem:[#allocation7 + $0x50] sm:$0xff]
    %v166 = vld [vmem:[#allocation7 + $0x58] sm:$0xff]
    %v167 = vld [vmem:[#allocation7 + $0x60] sm:$0xff]
    %v168 = vld [vmem:[#allocation7 + $0x68] sm:$0xff]
    %v169 = vld [vmem:[#allocation7 + $0x70] sm:$0xff]
    %v170 = vld [vmem:[#allocation7 + $0x78] sm:$0xff]
    %v171 = vld [vmem:[%s4] sm:$0x1]
    %v173 = vlaneseq
    %v174 = vshrl.u32 %v173, 7
    %v175 = vsub.s32 0, %v174
    %v176 = vrot.slane %v171, %v175
    %178 = vmatprep.subr.mxu0 0.0
    %179 = vmatpush1.msra.mxu0 %v155
    %180 = vmatprep.subr.mxu0 0.0
    %181 = vmatpush1.msra.mxu0 %v156
    %182 = vmatprep.subr.mxu0 0.0
    %183 = vmatpush1.msra.mxu0 %v157
    %184 = vmatprep.subr.mxu0 0.0
    %185 = vmatpush1.msra.mxu0 %v158
    %186 = vmatprep.subr.mxu0 0.0
    %187 = vmatpush1.msra.mxu0 %v159
    %188 = vmatprep.subr.mxu0 0.0
    %189 = vmatpush1.msra.mxu0 %v160
    %190 = vmatprep.subr.mxu0 0.0
    %191 = vmatpush1.msra.mxu0 %v161
    %192 = vmatprep.subr.mxu0 0.0
    %193 = vmatpush1.msra.mxu0 %v162
    %194 = vmatprep.subr.mxu0 0.0
    %195 = vmatpush1.msra.mxu0 %v163
    %196 = vmatprep.subr.mxu0 0.0
    %197 = vmatpush1.msra.mxu0 %v164
    %198 = vmatprep.subr.mxu0 0.0
    %199 = vmatpush1.msra.mxu0 %v165
    %200 = vmatprep.subr.mxu0 0.0
    %201 = vmatpush1.msra.mxu0 %v166
    %202 = vmatprep.subr.mxu0 0.0
    %203 = vmatpush1.msra.mxu0 %v167
    %204 = vmatprep.subr.mxu0 0.0
    %205 = vmatpush1.msra.mxu0 %v168
    %206 = vmatprep.subr.mxu0 0.0
    %207 = vmatpush1.msra.mxu0 %v169
    %208 = vmatprep.subr.mxu0 0.0
    %209 = vmatpush1.msra.mxu0 %v170
    %210 = vmatprep.subr.mxu0 0.0
    %211 = vmatpush1.msra.mxu0 0.0
    %212 = vmatprep.subr.mxu0 0.0
    %213 = vmatpush1.msra.mxu0 0.0
    %214 = vmatprep.subr.mxu0 0.0
    %215 = vmatpush1.msra.mxu0 0.0
    %216 = vmatprep.subr.mxu0 0.0
    %217 = vmatpush1.msra.mxu0 0.0
    %218 = vmatprep.subr.mxu0 0.0
    %219 = vmatpush1.msra.mxu0 0.0
    %220 = vmatprep.subr.mxu0 0.0
    %221 = vmatpush1.msra.mxu0 0.0
    %222 = vmatprep.subr.mxu0 0.0
    %223 = vmatpush1.msra.mxu0 0.0
    %224 = vmatprep.subr.mxu0 0.0
    %225 = vmatpush1.msra.mxu0 0.0
    %226 = vmatprep.subr.mxu0 0.0
    %227 = vmatpush1.msra.mxu0 0.0
    %228 = vmatprep.subr.mxu0 0.0
    %229 = vmatpush1.msra.mxu0 0.0
    %230 = vmatprep.subr.mxu0 0.0
    %231 = vmatpush1.msra.mxu0 0.0
    %232 = vmatprep.subr.mxu0 0.0
    %233 = vmatpush1.msra.mxu0 0.0
    %234 = vmatprep.subr.mxu0 0.0
    %235 = vmatpush1.msra.mxu0 0.0
    %236 = vmatprep.subr.mxu0 0.0
    %237 = vmatpush1.msra.mxu0 0.0
    %238 = vmatprep.subr.mxu0 0.0
    %239 = vmatpush1.msra.mxu0 0.0
    %240 = vmatprep.subr.mxu0 0.0
    %241 = vmatpush1.msra.mxu0 0.0
    %242 = vmatprep.mubr.f32.mxu0 0.0
    %243 = vmatmul.mubr.f32.gmra.mrb[0].mxu0 %v154
    %v244 = vpop.f32.mrb[0].mxu0
    %v245 = vadd.f32 %v176, %v244
    %v246 = vpop.f32.mrb[0].mxu0
    %247 = vdwg.mxu0
    %248 = vst [vmem:[#allocation8] sm:$0xff] %v245
    // Predicated region
    $region34: #{tpu_custom_call.1} parent=1 // pred_check
      _
    $region35: #{tpu_custom_call.1} parent=1 // pred_check_branch
      %250 = sbr.rel (0) target = $region37
    $region36: #{tpu_custom_call.1} parent=1 // pred_region
      %s252 = ssub.s32 128, 32
      %253 = vsyncadd [#allocation4], %s252
      %s254 = sshll.u32 [#allocation8], 4
      %s255 = int_to_ptr.vmem [resolvable:$true] %s254
      %260 = dma.vmem_to_hbm [thread:$0]  %s255, 32, %s5, [#allocation4], 32, 32, 2
    $region37: #{tpu_custom_call.1} parent=1 // pred_fallthru
      _
    // Predicated region
    $region38: #{tpu_custom_call.1} parent=1 // pred_check
      _
    $region39: #{tpu_custom_call.1} parent=1 // pred_check_branch
      %262 = sbr.rel (0) target = $region41
    $region40: #{tpu_custom_call.1} parent=1 // pred_region
      %263 = dma.done [#allocation4], 128
    $region41: #{tpu_custom_call.1} parent=1 // pred_fallthru
      _
    %264 = vsyncpa [#allocation3], 1
    %265 = vsyncpa [#allocation6], 1
    %266 = vsyncpa [#allocation4], 1

</llo_original>
